<compile_context>
chip_gen: v7x
topology: tpu7x:2x2x1
jax: 0.10.0
libtpu: 0.0.40
codegen_flags: <defaults>
</compile_context>

<pallas_src>
import functools

import jax
import jax.numpy as jnp
from jax.experimental import pallas as pl
from jax.experimental.pallas import tpu as pltpu


_MAX_LANE_TILE = 4096          # spatial (lane) tile cap, multiple of 128
_MAX_ROW_TILE = 512            # B*C (sublane) tile cap


def _sublane_quantum(dtype):
    # f32 -> 8, bf16 -> 16, int8 -> 32 rows per vreg sublane group.
    return 32 // jnp.dtype(dtype).itemsize


def _round_up(n, q):
    return -(-n // q) * q


@functools.lru_cache(maxsize=None)
def _vmem_limit_bytes():
    """Generation-aware scoped-VMEM request.

    128-MiB parts (v5e/v6e): 64 MiB gives plenty of headroom for 512x4096
    double-buffered tiles.  64-MiB parts (v7x-class): cap at 48 MiB so the
    compiler keeps scratch headroom.
    """
    try:
        cap = int(getattr(pltpu.get_tpu_info(), "vmem_capacity_bytes", 0)) or (64 << 20)
    except Exception:  # pragma: no cover - conservative fallback
        cap = 64 << 20
    return (48 << 20) if cap <= (64 << 20) else (64 << 20)


def _pick_tile(dim, quantum, max_tile, *, full_ok):
    """Return (tile, padded_dim) with padded_dim % tile == 0.

    tile is a multiple of `quantum` (or the full dim when `full_ok`).  Prefers
    an exact divisor (zero padding); otherwise the largest tile whose padding
    waste stays <= ~12.5% of the dim.  Never falls back to an arbitrarily wide
    full-dimension block for dims larger than `max_tile`.
    """
    if full_ok and dim <= max_tile:
        return dim, dim
    dim_q = _round_up(dim, quantum)
    if dim_q <= max_tile:
        return dim_q, dim_q
    cap = (max_tile // quantum) * quantum
    for t in range(cap, quantum - 1, -quantum):
        if dim_q % t == 0:
            return t, dim_q
    budget = max(dim_q // 8, quantum)
    for t in range(cap, quantum - 1, -quantum):
        pad = _round_up(dim_q, t)
        if pad - dim_q <= budget:
            return t, pad
    return quantum, dim_q


def _pad2d(a, rows_pad, cols_pad):
    r, c = a.shape
    if rows_pad == r and cols_pad == c:
        return a
    return jnp.pad(a, ((0, rows_pad - r), (0, cols_pad - c)))


# ---------------------------------------------------------------------------
# Phase 1: tiled spatial sum (global average pool numerator).
# ---------------------------------------------------------------------------
def _pool_sum_kernel(x_ref, sum_ref, acc_ref):
    # x_ref: (rt, lt) tile.  acc_ref: (rt, 128) f32 scratch, resident across
    # the inner reduction axis.  sum_ref: (1, rt, 1) output block, written once.
    k = pl.program_id(2)

    @pl.when(k == 0)
    def _():
        acc_ref[...] = jnp.zeros_like(acc_ref)

    # Lane-aligned 128-wide column adds: pure VPU work; keeps the XLU
    # cross-lane reduce and the masked (rt,1) store out of the per-step path.
    lt = x_ref.shape[-1]
    for c in range(lt // 128):
        acc_ref[...] += x_ref[:, c * 128:(c + 1) * 128].astype(jnp.float32)

    @pl.when(k == pl.num_programs(2) - 1)
    def _():
        sum_ref[0] = jnp.sum(acc_ref[...], axis=-1, keepdims=True)


def _spatial_sum(x2d):
    """Row-wise spatial sums of a (rows, hw) array, f32, shape (rows, 1)."""
    rows, hw = x2d.shape
    dtype = x2d.dtype
    rt, rows_p = _pick_tile(rows, _sublane_quantum(dtype), _MAX_ROW_TILE, full_ok=True)
    lt, hw_p = _pick_tile(hw, 128, _MAX_LANE_TILE, full_ok=False)
    xp = _pad2d(x2d, rows_p, hw_p)

    n_row_blocks = rows_p // rt
    n_lane_blocks = hw_p // lt
    # Split-K across the spatial axis when the row axis has a single block, so
    # megacore (v7x) still gets two parallel work items.
    n_splits = 2 if (n_row_blocks == 1 and n_lane_blocks >= 2
                     and n_lane_blocks % 2 == 0) else 1
    k_per_split = n_lane_blocks // n_splits

    itemsize = jnp.dtype(dtype).itemsize
    cost = pl.CostEstimate(
        flops=rows_p * hw_p,
        transcendentals=0,
        bytes_accessed=rows_p * hw_p * itemsize + n_splits * rows_p * 4,
    )

    out = pl.pallas_call(
        _pool_sum_kernel,
        out_shape=jax.ShapeDtypeStruct((n_splits, rows_p, 1), jnp.float32),
        grid_spec=pltpu.PrefetchScalarGridSpec(
            num_scalar_prefetch=0,
            grid=(n_row_blocks, n_splits, k_per_split),   # reduction axis last
            in_specs=[pl.BlockSpec(
                (rt, lt), lambda i, s, k, kps=k_per_split: (i, s * kps + k))],
            out_specs=pl.BlockSpec((1, rt, 1), lambda i, s, k: (s, i, 0)),
            scratch_shapes=[pltpu.VMEM((rt, 128), jnp.float32)],
        ),
        compiler_params=pltpu.CompilerParams(
            dimension_semantics=("parallel", "parallel", "arbitrary"),
            vmem_limit_bytes=_vmem_limit_bytes(),
        ),
        cost_estimate=cost,
    )(xp)

    # Combine the (<=2) split-K partials and drop any padded rows.
    return out.sum(axis=0)[:rows]


# ---------------------------------------------------------------------------
# Phase 3: tiled per-channel scale + ReLU (lane-dense, input dtype).
# ---------------------------------------------------------------------------
def _scale_relu_kernel(scale_ref, x_ref, out_ref):
    # scale_ref: (rt, 1); its block index is constant across the spatial axis,
    # so it stays VMEM-resident for all spatial tiles of a row block.
    out_ref[...] = jnp.maximum(x_ref[...] * scale_ref[...], 0).astype(out_ref.dtype)


def _scale_relu(x2d, scale_col):
    rows, hw = x2d.shape
    dtype = x2d.dtype
    rt, rows_p = _pick_tile(rows, _sublane_quantum(dtype), _MAX_ROW_TILE, full_ok=True)
    lt, hw_p = _pick_tile(hw, 128, _MAX_LANE_TILE, full_ok=False)
    xp = _pad2d(x2d, rows_p, hw_p)
    sp = _pad2d(scale_col, rows_p, 1)

    itemsize = jnp.dtype(dtype).itemsize
    cost = pl.CostEstimate(
        flops=2 * rows_p * hw_p,
        transcendentals=0,
        bytes_accessed=2 * rows_p * hw_p * itemsize + rows_p * itemsize,
    )

    out = pl.pallas_call(
        _scale_relu_kernel,
        out_shape=jax.ShapeDtypeStruct((rows_p, hw_p), dtype),
        grid_spec=pltpu.PrefetchScalarGridSpec(
            num_scalar_prefetch=0,
            grid=(rows_p // rt, hw_p // lt),
            in_specs=[
                pl.BlockSpec((rt, 1), lambda i, j: (i, 0)),    # scale (resident)
                pl.BlockSpec((rt, lt), lambda i, j: (i, j)),   # x tile
            ],
            out_specs=pl.BlockSpec((rt, lt), lambda i, j: (i, j)),
        ),
        compiler_params=pltpu.CompilerParams(
            dimension_semantics=("parallel", "parallel"),
            vmem_limit_bytes=_vmem_limit_bytes(),
        ),
        cost_estimate=cost,
    )(sp, xp)

    if (rows_p, hw_p) != (rows, hw):
        out = out[:rows, :hw]
    return out


# ---------------------------------------------------------------------------
# Full CCA forward.
# ---------------------------------------------------------------------------
@jax.jit
def cca_forward(g, x, params):
    """g: (B, F_g, Hg, Wg), x: (B, F_x, H, W) -- NCHW, like PyTorch."""
    B, F_x, H, W = x.shape
    _, F_g, Hg, Wg = g.shape

    x2d = x.reshape(B * F_x, H * W)
    g2d = g.reshape(B * F_g, Hg * Wg)

    # Phase 1: tiled spatial sums; divide once by the true pixel count
    # (zero padding, if any, contributes nothing to the sums).
    pool_x = _spatial_sum(x2d).reshape(B, F_x) * (1.0 / (H * W))
    pool_g = _spatial_sum(g2d).reshape(B, F_g) * (1.0 / (Hg * Wg))

    # Phase 2: the two tiny Linears fused into a single matmul + sigmoid.
    # Negligible FLOPs -> plain JAX between the two memory-bound passes.
    w_cat = jnp.concatenate([params["wx"], params["wg"]], axis=1).T  # (F_x+F_g, F_x)
    pool_cat = jnp.concatenate([pool_x, pool_g], axis=1)             # (B, F_x+F_g)
    att = (pool_cat @ w_cat + params["bx"] + params["bg"]) * 0.5
    scale = jax.nn.sigmoid(att).astype(x.dtype).reshape(B * F_x, 1)

    # Phase 3: lane-dense scale * x + ReLU in the input dtype.
    out2d = _scale_relu(x2d, scale)
    return out2d.reshape(B, F_x, H, W)


def init_cca_params(key, F_g, F_x):
    """Deterministic init mimicking nn.Linear default (uniform +/- 1/sqrt(fan_in))."""
    k1, k2, k3, k4 = jax.random.split(key, 4)
    lim_x = 1.0 / jnp.sqrt(F_x)
    lim_g = 1.0 / jnp.sqrt(F_g)
    return {
        # torch Linear weight shape is (out_features, in_features)
        "wx": jax.random.uniform(k1, (F_x, F_x), jnp.float32, -lim_x, lim_x),
        "bx": jax.random.uniform(k2, (F_x,), jnp.float32, -lim_x, lim_x),
        "wg": jax.random.uniform(k3, (F_x, F_g), jnp.float32, -lim_g, lim_g),
        "bg": jax.random.uniform(k4, (F_x,), jnp.float32, -lim_g, lim_g),
    }


def cca_reference(g, x, params):
    """Pure-JAX reference of the PyTorch forward (for sanity checking)."""
    pool_x = jnp.mean(x, axis=(2, 3))                       # (B, F_x)
    pool_g = jnp.mean(g, axis=(2, 3))                       # (B, F_g)
    att_x = pool_x @ params["wx"].T + params["bx"]
    att_g = pool_g @ params["wg"].T + params["bg"]
    scale = jax.nn.sigmoid((att_x + att_g) / 2.0)[:, :, None, None]
    return jnp.maximum(x * scale, 0.0)


def _run_case(key, B, F_g, F_x, H, W):
    kg, kx, kp = jax.random.split(key, 3)
    g = jax.random.normal(kg, (B, F_g, H, W), jnp.float32)
    x = jax.random.normal(kx, (B, F_x, H, W), jnp.float32)
    params = init_cca_params(kp, F_g, F_x)

    out = jax.block_until_ready(cca_forward(g, x, params))
    ref = cca_reference(g, x, params)
    assert out.shape == x.shape
    assert jnp.allclose(out, ref, atol=1e-4, rtol=1e-4), (
        f"mismatch: max abs err {jnp.max(jnp.abs(out - ref))}")


if __name__ == "__main__":
    key = jax.random.PRNGKey(0)
    k1, k2, k3 = jax.random.split(key, 3)

    # Small config (single-tile grid).
    _run_case(k1, B=2, F_g=8, F_x=4, H=16, W=16)
    # HW = 8192 -> two 4096-lane tiles with a single row block, exercising the
    # multi-step reduction and the split-K parallel axis.
    _run_case(k2, B=2, F_g=8, F_x=16, H=64, W=128)
    # Non-128-multiple spatial extent (HW = 100), exercising the padding path.
    _run_case(k3, B=2, F_g=8, F_x=4, H=10, W=10)

    print("KERNEL_OK")
</pallas_src>

<mosaic_0001>
module attributes {stable_mosaic.version = 11 : i64} {
  func.func @_pool_sum_kernel(%arg0: i32, %arg1: i32, %arg2: i32, %arg3: memref<8x256xf32, #tpu.memory_space<vmem>>, %arg4: memref<1x8x1xf32, #tpu.memory_space<vmem>>, %arg5: memref<8x128xf32, #tpu.memory_space<vmem>>) attributes {dimension_semantics = [#tpu.dimension_semantics<parallel>, #tpu.dimension_semantics<parallel>, #tpu.dimension_semantics<arbitrary>], iteration_bounds = array<i64: 1, 1, 1>, scalar_prefetch = 0 : i64, scratch_operands = 1 : i64, tpu.core_type = #tpu.core_type<tc>, window_params = [{transform_indices = @transform_0, window_bounds = array<i64: 8, 256>}, {transform_indices = @transform_1, window_bounds = array<i64: 1, 8, 1>}]} {
    %c0_i32 = arith.constant 0 : i32
    %0 = arith.cmpi eq, %arg2, %c0_i32 : i32
    %1 = arith.extui %0 : i1 to i32
    %c0_i32_0 = arith.constant 0 : i32
    %2 = arith.cmpi ne, %1, %c0_i32_0 : i32
    scf.if %2 {
      %cst = arith.constant 0.000000e+00 : f32
      %14 = vector.broadcast %cst : f32 to vector<8x128xf32>
      %c0_13 = arith.constant 0 : index
      %c0_14 = arith.constant 0 : index
      %15 = vector.load %arg5[%c0_13, %c0_14] : memref<8x128xf32, #tpu.memory_space<vmem>>, vector<8x128xf32>
      tpu.vector_store %arg5[%c0_13, %c0_14], %14 {strides = array<i32>} : memref<8x128xf32, #tpu.memory_space<vmem>>, vector<8x128xf32>,
    } else {
    }
    %c0 = arith.constant 0 : index
    %c0_1 = arith.constant 0 : index
    %3 = vector.load %arg5[%c0, %c0_1] : memref<8x128xf32, #tpu.memory_space<vmem>>, vector<8x128xf32>
    %c0_2 = arith.constant 0 : index
    %c0_3 = arith.constant 0 : index
    %4 = vector.load %arg3[%c0_2, %c0_3] : memref<8x256xf32, #tpu.memory_space<vmem>>, vector<8x128xf32>
    %5 = arith.addf %3, %4 : vector<8x128xf32>
    %c0_4 = arith.constant 0 : index
    %c0_5 = arith.constant 0 : index
    %6 = vector.load %arg5[%c0_4, %c0_5] : memref<8x128xf32, #tpu.memory_space<vmem>>, vector<8x128xf32>
    tpu.vector_store %arg5[%c0_4, %c0_5], %5 {strides = array<i32>} : memref<8x128xf32, #tpu.memory_space<vmem>>, vector<8x128xf32>,
    %c0_6 = arith.constant 0 : index
    %c0_7 = arith.constant 0 : index
    %7 = vector.load %arg5[%c0_6, %c0_7] : memref<8x128xf32, #tpu.memory_space<vmem>>, vector<8x128xf32>
    %c0_8 = arith.constant 0 : index
    %c128 = arith.constant 128 : index
    %8 = vector.load %arg3[%c0_8, %c128] : memref<8x256xf32, #tpu.memory_space<vmem>>, vector<8x128xf32>
    %9 = arith.addf %7, %8 : vector<8x128xf32>
    %c0_9 = arith.constant 0 : index
    %c0_10 = arith.constant 0 : index
    %10 = vector.load %arg5[%c0_9, %c0_10] : memref<8x128xf32, #tpu.memory_space<vmem>>, vector<8x128xf32>
    tpu.vector_store %arg5[%c0_9, %c0_10], %9 {strides = array<i32>} : memref<8x128xf32, #tpu.memory_space<vmem>>, vector<8x128xf32>,
    %c0_i32_11 = arith.constant 0 : i32
    %11 = arith.cmpi eq, %arg2, %c0_i32_11 : i32
    %12 = arith.extui %11 : i1 to i32
    %c0_i32_12 = arith.constant 0 : i32
    %13 = arith.cmpi ne, %12, %c0_i32_12 : i32
    scf.if %13 {
      %c0_13 = arith.constant 0 : index
      %c0_14 = arith.constant 0 : index
      %14 = vector.load %arg5[%c0_13, %c0_14] : memref<8x128xf32, #tpu.memory_space<vmem>>, vector<8x128xf32>
      %cst = arith.constant dense<0.000000e+00> : vector<8xf32>
      %15 = vector.multi_reduction <add>, %14, %cst [1] : vector<8x128xf32> to vector<8xf32>
      %16 = vector.shape_cast %15 : vector<8xf32> to vector<8x1xf32>
      %c0_15 = arith.constant 0 : index
      %c0_16 = arith.constant 0 : index
      %c0_17 = arith.constant 0 : index
      %17 = vector.load %arg4[%c0_15, %c0_16, %c0_17] : memref<1x8x1xf32, #tpu.memory_space<vmem>>, vector<1x8x1xf32>
      %18 = vector.shape_cast %17 : vector<1x8x1xf32> to vector<8x1xf32>
      %19 = vector.shape_cast %16 : vector<8x1xf32> to vector<1x8x1xf32>
      tpu.vector_store %arg4[%c0_15, %c0_16, %c0_17], %19 {strides = array<i32>} : memref<1x8x1xf32, #tpu.memory_space<vmem>>, vector<1x8x1xf32>,
    } else {
    }
    return
  }
  func.func @transform_0(%arg0: i32, %arg1: i32, %arg2: i32) -> (i32, i32) {
    %c1_i32 = arith.constant 1 : i32
    %0 = arith.muli %arg1, %c1_i32 : i32
    %1 = arith.addi %0, %arg2 : i32
    %c0_i32 = arith.constant 0 : i32
    return %arg0, %1 : i32, i32
  }
  func.func @transform_1(%arg0: i32, %arg1: i32, %arg2: i32) -> (i32, i32, i32) {
    %c0_i32 = arith.constant 0 : i32
    %c0_i32_0 = arith.constant 0 : i32
    return %arg1, %arg0, %c0_i32 : i32, i32, i32
  }
}

module attributes {stable_mosaic.version = 11 : i64} {
  func.func @_pool_sum_kernel(%arg0: i32, %arg1: i32, %arg2: i32, %arg3: memref<16x256xf32, #tpu.memory_space<vmem>>, %arg4: memref<1x16x1xf32, #tpu.memory_space<vmem>>, %arg5: memref<16x128xf32, #tpu.memory_space<vmem>>) attributes {dimension_semantics = [#tpu.dimension_semantics<parallel>, #tpu.dimension_semantics<parallel>, #tpu.dimension_semantics<arbitrary>], iteration_bounds = array<i64: 1, 1, 1>, scalar_prefetch = 0 : i64, scratch_operands = 1 : i64, tpu.core_type = #tpu.core_type<tc>, window_params = [{transform_indices = @transform_0, window_bounds = array<i64: 16, 256>}, {transform_indices = @transform_1, window_bounds = array<i64: 1, 16, 1>}]} {
    %c0_i32 = arith.constant 0 : i32
    %0 = arith.cmpi eq, %arg2, %c0_i32 : i32
    %1 = arith.extui %0 : i1 to i32
    %c0_i32_0 = arith.constant 0 : i32
    %2 = arith.cmpi ne, %1, %c0_i32_0 : i32
    scf.if %2 {
      %cst = arith.constant 0.000000e+00 : f32
      %14 = vector.broadcast %cst : f32 to vector<16x128xf32>
      %c0_13 = arith.constant 0 : index
      %c0_14 = arith.constant 0 : index
      %15 = vector.load %arg5[%c0_13, %c0_14] : memref<16x128xf32, #tpu.memory_space<vmem>>, vector<16x128xf32>
      tpu.vector_store %arg5[%c0_13, %c0_14], %14 {strides = array<i32>} : memref<16x128xf32, #tpu.memory_space<vmem>>, vector<16x128xf32>,
    } else {
    }
    %c0 = arith.constant 0 : index
    %c0_1 = arith.constant 0 : index
    %3 = vector.load %arg5[%c0, %c0_1] : memref<16x128xf32, #tpu.memory_space<vmem>>, vector<16x128xf32>
    %c0_2 = arith.constant 0 : index
    %c0_3 = arith.constant 0 : index
    %4 = vector.load %arg3[%c0_2, %c0_3] : memref<16x256xf32, #tpu.memory_space<vmem>>, vector<16x128xf32>
    %5 = arith.addf %3, %4 : vector<16x128xf32>
    %c0_4 = arith.constant 0 : index
    %c0_5 = arith.constant 0 : index
    %6 = vector.load %arg5[%c0_4, %c0_5] : memref<16x128xf32, #tpu.memory_space<vmem>>, vector<16x128xf32>
    tpu.vector_store %arg5[%c0_4, %c0_5], %5 {strides = array<i32>} : memref<16x128xf32, #tpu.memory_space<vmem>>, vector<16x128xf32>,
    %c0_6 = arith.constant 0 : index
    %c0_7 = arith.constant 0 : index
    %7 = vector.load %arg5[%c0_6, %c0_7] : memref<16x128xf32, #tpu.memory_space<vmem>>, vector<16x128xf32>
    %c0_8 = arith.constant 0 : index
    %c128 = arith.constant 128 : index
    %8 = vector.load %arg3[%c0_8, %c128] : memref<16x256xf32, #tpu.memory_space<vmem>>, vector<16x128xf32>
    %9 = arith.addf %7, %8 : vector<16x128xf32>
    %c0_9 = arith.constant 0 : index
    %c0_10 = arith.constant 0 : index
    %10 = vector.load %arg5[%c0_9, %c0_10] : memref<16x128xf32, #tpu.memory_space<vmem>>, vector<16x128xf32>
    tpu.vector_store %arg5[%c0_9, %c0_10], %9 {strides = array<i32>} : memref<16x128xf32, #tpu.memory_space<vmem>>, vector<16x128xf32>,
    %c0_i32_11 = arith.constant 0 : i32
    %11 = arith.cmpi eq, %arg2, %c0_i32_11 : i32
    %12 = arith.extui %11 : i1 to i32
    %c0_i32_12 = arith.constant 0 : i32
    %13 = arith.cmpi ne, %12, %c0_i32_12 : i32
    scf.if %13 {
      %c0_13 = arith.constant 0 : index
      %c0_14 = arith.constant 0 : index
      %14 = vector.load %arg5[%c0_13, %c0_14] : memref<16x128xf32, #tpu.memory_space<vmem>>, vector<16x128xf32>
      %cst = arith.constant dense<0.000000e+00> : vector<16xf32>
      %15 = vector.multi_reduction <add>, %14, %cst [1] : vector<16x128xf32> to vector<16xf32>
      %16 = vector.shape_cast %15 : vector<16xf32> to vector<16x1xf32>
      %c0_15 = arith.constant 0 : index
      %c0_16 = arith.constant 0 : index
      %c0_17 = arith.constant 0 : index
      %17 = vector.load %arg4[%c0_15, %c0_16, %c0_17] : memref<1x16x1xf32, #tpu.memory_space<vmem>>, vector<1x16x1xf32>
      %18 = vector.shape_cast %17 : vector<1x16x1xf32> to vector<16x1xf32>
      %19 = vector.shape_cast %16 : vector<16x1xf32> to vector<1x16x1xf32>
      tpu.vector_store %arg4[%c0_15, %c0_16, %c0_17], %19 {strides = array<i32>} : memref<1x16x1xf32, #tpu.memory_space<vmem>>, vector<1x16x1xf32>,
    } else {
    }
    return
  }
  func.func @transform_0(%arg0: i32, %arg1: i32, %arg2: i32) -> (i32, i32) {
    %c1_i32 = arith.constant 1 : i32
    %0 = arith.muli %arg1, %c1_i32 : i32
    %1 = arith.addi %0, %arg2 : i32
    %c0_i32 = arith.constant 0 : i32
    return %arg0, %1 : i32, i32
  }
  func.func @transform_1(%arg0: i32, %arg1: i32, %arg2: i32) -> (i32, i32, i32) {
    %c0_i32 = arith.constant 0 : i32
    %c0_i32_0 = arith.constant 0 : i32
    return %arg1, %arg0, %c0_i32 : i32, i32, i32
  }
}

module attributes {stable_mosaic.version = 11 : i64} {
  func.func @_scale_relu_kernel(%arg0: i32, %arg1: i32, %arg2: memref<8x1xf32, #tpu.memory_space<vmem>>, %arg3: memref<8x256xf32, #tpu.memory_space<vmem>>, %arg4: memref<8x256xf32, #tpu.memory_space<vmem>>) attributes {dimension_semantics = [#tpu.dimension_semantics<parallel>, #tpu.dimension_semantics<parallel>], iteration_bounds = array<i64: 1, 1>, scalar_prefetch = 0 : i64, scratch_operands = 0 : i64, tpu.core_type = #tpu.core_type<tc>, window_params = [{transform_indices = @transform_0, window_bounds = array<i64: 8, 1>}, {transform_indices = @transform_1, window_bounds = array<i64: 8, 256>}, {transform_indices = @transform_2, window_bounds = array<i64: 8, 256>}]} {
    %c0 = arith.constant 0 : index
    %c0_0 = arith.constant 0 : index
    %0 = vector.load %arg3[%c0, %c0_0] : memref<8x256xf32, #tpu.memory_space<vmem>>, vector<8x256xf32>
    %c0_1 = arith.constant 0 : index
    %c0_2 = arith.constant 0 : index
    %1 = vector.load %arg2[%c0_1, %c0_2] : memref<8x1xf32, #tpu.memory_space<vmem>>, vector<8x1xf32>
    %2 = vector.broadcast %1 : vector<8x1xf32> to vector<8x256xf32>
    %3 = arith.mulf %0, %2 : vector<8x256xf32>
    %cst = arith.constant 0.000000e+00 : f32
    %4 = vector.broadcast %cst : f32 to vector<8x256xf32>
    %5 = arith.maximumf %3, %4 : vector<8x256xf32>
    %c0_3 = arith.constant 0 : index
    %c0_4 = arith.constant 0 : index
    %6 = vector.load %arg4[%c0_3, %c0_4] : memref<8x256xf32, #tpu.memory_space<vmem>>, vector<8x256xf32>
    tpu.vector_store %arg4[%c0_3, %c0_4], %5 {strides = array<i32>} : memref<8x256xf32, #tpu.memory_space<vmem>>, vector<8x256xf32>,
    return
  }
  func.func @transform_0(%arg0: i32, %arg1: i32) -> (i32, i32) {
    %c0_i32 = arith.constant 0 : i32
    %c0_i32_0 = arith.constant 0 : i32
    return %arg0, %c0_i32 : i32, i32
  }
  func.func @transform_1(%arg0: i32, %arg1: i32) -> (i32, i32) {
    %c0_i32 = arith.constant 0 : i32
    return %arg0, %arg1 : i32, i32
  }
  func.func @transform_2(%arg0: i32, %arg1: i32) -> (i32, i32) {
    %c0_i32 = arith.constant 0 : i32
    return %arg0, %arg1 : i32, i32
  }
}

</mosaic_0001>

<llo_original>
// kernel: cca_forward.4
$region0: #{cca_forward.4}
  #allocation0 [shape = 'u32[]', space=smem, size = 0x4, offset = 0x4, fixed_abs, tag = 'smem constant byte address 0x4 - core index']
  #allocation1 [shape = 'u32[144,128]{1,0:T(1,128)}', space=vmem, size = 0x12000, scoped, tag = 'internal scratch']
  #allocation2 [shape = 'f32[16,128]{1,0:T(8,128)}', space=vmem, size = 0x2000, scoped, tag = 'scratch operand']
  %s0 = inlined_call_operand.vmem [shape: f32[16,256], index: 0, kind: input, shape index: {}]
  %s1 = inlined_call_operand.vmem [shape: f32[1,16,1], index: 1, kind: output, shape index: {}]
  %s2 = sld [smem:[#allocation0]]
  $region22: #{cca_forward.4} parent=0
    _
  %s4 = ssub.s32 1, %s2
  %s5 = scalar_select 0, %s4, %s2
  // Predicated region
  $region2: #{cca_forward.4} parent=0 // pred_check
    _
  $region3: #{cca_forward.4} parent=0 // pred_check_branch
    %7 = sbr.rel (0) target = $region5
  $region4: #{cca_forward.4} parent=0 // pred_region
    %s8 = sadd.s32 0, 0
    %s9 = smul.u32 2, %s8
    %p10 = scmp.lt.s32.totalorder %s9, 1
    %s11 = scalar_select %p10, %s9, 1
    %s12 = smul.addr %s11, 8
    %s13 = scalar_lea.vmem %s0, %s12
    %s14 = sadd.s32 0, 0
    %s15 = smul.u32 2, %s14
  $region5: #{cca_forward.4} parent=0 // pred_fallthru
    _
  %s16 = sadd.s32 0, 0
  %s17 = smul.u32 2, %s16
  %p18 = scmp.lt.s32.totalorder %s17, 1
  %s19 = scalar_select %p18, %s17, 1
  %s20 = smul.addr %s19, 8
  %s21 = scalar_lea.vmem %s0, %s20
  %s22 = sadd.s32 0, 0
  %s23 = smul.u32 2, %s22
  %p24 = scmp.lt.s32.totalorder %s23, 1
  %s25 = scalar_select %p24, %s23, 1
  %s26 = smul.addr %s25, 8
  %s27 = scalar_lea.vmem %s0, %s26
  %s28 = sadd.s32 0, 0
  %s29 = smul.u32 2, %s28
  %p30 = scmp.eq.s32.totalorder 0, 0
  // Predicated region
  $region6: #{cca_forward.4} parent=0 // pred_check
    %p31 = pneg %p30
  $region7: #{cca_forward.4} parent=0 // pred_check_branch
    %33 = sbr.rel (%p31) target = $region9
  $region8: #{cca_forward.4} parent=0 // pred_region
    %34 = vst [vmem:[#allocation2] sm:$0xff] 0.0
    %35 = vst [vmem:[#allocation2 + $0x8] sm:$0xff] 0.0
  $region9: #{cca_forward.4} parent=0 // pred_fallthru
    _
  %v36 = vld [vmem:[#allocation2] sm:$0xff]
  %v37 = vld [vmem:[#allocation2 + $0x8] sm:$0xff]
  %v38 = vld [vmem:[%s27] sm:$0xff]
  %v39 = vld [vmem:[%s27 + $0x10] sm:$0xff]
  %v40 = vadd.f32 %v36, %v38
  %v41 = vadd.f32 %v37, %v39
  %42 = vst [vmem:[#allocation2] sm:$0xff] %v40
  %43 = vst [vmem:[#allocation2 + $0x8] sm:$0xff] %v41
  %v44 = vld [vmem:[#allocation2] sm:$0xff]
  %v45 = vld [vmem:[#allocation2 + $0x8] sm:$0xff]
  %v46 = vld [vmem:[%s27 + $0x8] sm:$0xff]
  %v47 = vld [vmem:[%s27 + $0x18] sm:$0xff]
  %v48 = vadd.f32 %v44, %v46
  %v49 = vadd.f32 %v45, %v47
  %50 = vst [vmem:[#allocation2] sm:$0xff] %v48
  %51 = vst [vmem:[#allocation2 + $0x8] sm:$0xff] %v49
  // Predicated region
  $region10: #{cca_forward.4} parent=0 // pred_check
    %p52 = pneg %p30
  $region11: #{cca_forward.4} parent=0 // pred_check_branch
    %54 = sbr.rel (%p52) target = $region13
  $region12: #{cca_forward.4} parent=0 // pred_region
    %v55 = vld [vmem:[#allocation2] sm:$0xff]
    %v56 = vld [vmem:[#allocation2 + $0x8] sm:$0xff]
    %57 = vadd.xlane.f32.xlu0 %v55
    %v58 = vpop.xlane.xlu0 %57
    %59 = vadd.xlane.f32.xlu0 %v56
    %v60 = vpop.xlane.xlu0 %59
    %vm61 = vcmask 7168
    %62 = vst.msk [vmem:[%s1] sm:$0xff] %vm61, %v58
    %63 = vst.msk [vmem:[%s1 + $0x8] sm:$0xff] %vm61, %v60
  $region13: #{cca_forward.4} parent=0 // pred_fallthru
    _
  // Predicated region
  $region14: #{cca_forward.4} parent=0 // pred_check
    _
  $region15: #{cca_forward.4} parent=0 // pred_check_branch
    %65 = sbr.rel (0) target = $region17
  $region16: #{cca_forward.4} parent=0 // pred_region
    _
  $region17: #{cca_forward.4} parent=0 // pred_fallthru
    _
  // Predicated region
  $region18: #{cca_forward.4} parent=0 // pred_check
    _
  $region19: #{cca_forward.4} parent=0 // pred_check_branch
    %67 = sbr.rel (0) target = $region21
  $region20: #{cca_forward.4} parent=0 // pred_region
    _
  $region21: #{cca_forward.4} parent=0 // pred_fallthru
    _

// kernel: cca_forward.3
$region0: #{cca_forward.3}
  #allocation0 [shape = 'u32[]', space=smem, size = 0x4, offset = 0x4, fixed_abs, tag = 'smem constant byte address 0x4 - core index']
  #allocation1 [shape = 'u32[144,128]{1,0:T(1,128)}', space=vmem, size = 0x12000, scoped, tag = 'internal scratch']
  #allocation2 [shape = 'f32[8,128]{1,0:T(8,128)}', space=vmem, size = 0x1000, scoped, tag = 'scratch operand']
  %s0 = inlined_call_operand.vmem [shape: f32[8,256], index: 0, kind: input, shape index: {}]
  %s1 = inlined_call_operand.vmem [shape: f32[1,8,1], index: 1, kind: output, shape index: {}]
  %s2 = sld [smem:[#allocation0]]
  $region22: #{cca_forward.3} parent=0
    _
  %s4 = ssub.s32 1, %s2
  %s5 = scalar_select 0, %s4, %s2
  // Predicated region
  $region2: #{cca_forward.3} parent=0 // pred_check
    _
  $region3: #{cca_forward.3} parent=0 // pred_check_branch
    %7 = sbr.rel (0) target = $region5
  $region4: #{cca_forward.3} parent=0 // pred_region
    %s8 = sadd.s32 0, 0
    %s9 = smul.u32 2, %s8
    %p10 = scmp.lt.s32.totalorder %s9, 1
    %s11 = scalar_select %p10, %s9, 1
    %s12 = smul.addr %s11, 8
    %s13 = scalar_lea.vmem %s0, %s12
    %s14 = sadd.s32 0, 0
    %s15 = smul.u32 2, %s14
  $region5: #{cca_forward.3} parent=0 // pred_fallthru
    _
  %s16 = sadd.s32 0, 0
  %s17 = smul.u32 2, %s16
  %p18 = scmp.lt.s32.totalorder %s17, 1
  %s19 = scalar_select %p18, %s17, 1
  %s20 = smul.addr %s19, 8
  %s21 = scalar_lea.vmem %s0, %s20
  %s22 = sadd.s32 0, 0
  %s23 = smul.u32 2, %s22
  %p24 = scmp.lt.s32.totalorder %s23, 1
  %s25 = scalar_select %p24, %s23, 1
  %s26 = smul.addr %s25, 8
  %s27 = scalar_lea.vmem %s0, %s26
  %s28 = sadd.s32 0, 0
  %s29 = smul.u32 2, %s28
  %p30 = scmp.eq.s32.totalorder 0, 0
  // Predicated region
  $region6: #{cca_forward.3} parent=0 // pred_check
    %p31 = pneg %p30
  $region7: #{cca_forward.3} parent=0 // pred_check_branch
    %33 = sbr.rel (%p31) target = $region9
  $region8: #{cca_forward.3} parent=0 // pred_region
    %34 = vst [vmem:[#allocation2] sm:$0xff] 0.0
  $region9: #{cca_forward.3} parent=0 // pred_fallthru
    _
  %v35 = vld [vmem:[#allocation2] sm:$0xff]
  %v36 = vld [vmem:[%s27] sm:$0xff]
  %v37 = vadd.f32 %v35, %v36
  %38 = vst [vmem:[#allocation2] sm:$0xff] %v37
  %v39 = vld [vmem:[#allocation2] sm:$0xff]
  %v40 = vld [vmem:[%s27 + $0x8] sm:$0xff]
  %v41 = vadd.f32 %v39, %v40
  %42 = vst [vmem:[#allocation2] sm:$0xff] %v41
  // Predicated region
  $region10: #{cca_forward.3} parent=0 // pred_check
    %p43 = pneg %p30
  $region11: #{cca_forward.3} parent=0 // pred_check_branch
    %45 = sbr.rel (%p43) target = $region13
  $region12: #{cca_forward.3} parent=0 // pred_region
    %v46 = vld [vmem:[#allocation2] sm:$0xff]
    %47 = vadd.xlane.f32.xlu0 %v46
    %v48 = vpop.xlane.xlu0 %47
    %vm49 = vcmask 7168
    %50 = vst.msk [vmem:[%s1] sm:$0xff] %vm49, %v48
  $region13: #{cca_forward.3} parent=0 // pred_fallthru
    _
  // Predicated region
  $region14: #{cca_forward.3} parent=0 // pred_check
    _
  $region15: #{cca_forward.3} parent=0 // pred_check_branch
    %52 = sbr.rel (0) target = $region17
  $region16: #{cca_forward.3} parent=0 // pred_region
    _
  $region17: #{cca_forward.3} parent=0 // pred_fallthru
    _
  // Predicated region
  $region18: #{cca_forward.3} parent=0 // pred_check
    _
  $region19: #{cca_forward.3} parent=0 // pred_check_branch
    %54 = sbr.rel (0) target = $region21
  $region20: #{cca_forward.3} parent=0 // pred_region
    _
  $region21: #{cca_forward.3} parent=0 // pred_fallthru
    _

// kernel: cca_forward.5
$region0: #{cca_forward.5}
  #allocation0 [shape = 'u32[]', space=smem, size = 0x4, offset = 0x4, fixed_abs, tag = 'smem constant byte address 0x4 - core index']
  #allocation1 [shape = 'u32[144,128]{1,0:T(1,128)}', space=vmem, size = 0x12000, scoped, tag = 'internal scratch']
  %s0 = inlined_call_operand.vmem [shape: f32[8,1], index: 0, kind: input, shape index: {}]
  %s1 = inlined_call_operand.vmem [shape: f32[8,256], index: 1, kind: input, shape index: {}]
  %s2 = inlined_call_operand.vmem [shape: f32[8,256], index: 2, kind: output, shape index: {}]
  %s3 = sld [smem:[#allocation0]]
  $region18: #{cca_forward.5} parent=0
    _
  %s5 = ssub.s32 1, %s3
  %s6 = scalar_select 0, %s5, %s3
  // Predicated region
  $region2: #{cca_forward.5} parent=0 // pred_check
    _
  $region3: #{cca_forward.5} parent=0 // pred_check_branch
    %8 = sbr.rel (0) target = $region5
  $region4: #{cca_forward.5} parent=0 // pred_region
    _
  $region5: #{cca_forward.5} parent=0 // pred_fallthru
    _
  // Predicated region
  $region6: #{cca_forward.5} parent=0 // pred_check
    _
  $region7: #{cca_forward.5} parent=0 // pred_check_branch
    %10 = sbr.rel (0) target = $region9
  $region8: #{cca_forward.5} parent=0 // pred_region
    _
  $region9: #{cca_forward.5} parent=0 // pred_fallthru
    _
  %v11 = vld [vmem:[%s1] sm:$0xff]
  %v12 = vld [vmem:[%s1 + $0x8] sm:$0xff]
  %v13 = vld [vmem:[%s0] sm:$0xff]
  %15 = vset.pattern.permute.xlu0 0
  %16 = vperm.xlu0 %15, %v13
  %v17 = vpop.permute.xlu0 %16
  %v19 = vmul.f32 %v11, %v17
  %v20 = vmul.f32 %v12, %v17
  %v21 = vmax.f32 %v19, 0.0
  %v22 = vmax.f32 %v20, 0.0
  %23 = vst [vmem:[%s2] sm:$0xff] %v21
  %24 = vst [vmem:[%s2 + $0x8] sm:$0xff] %v22
  // Predicated region
  $region10: #{cca_forward.5} parent=0 // pred_check
    _
  $region11: #{cca_forward.5} parent=0 // pred_check_branch
    %26 = sbr.rel (0) target = $region13
  $region12: #{cca_forward.5} parent=0 // pred_region
    _
  $region13: #{cca_forward.5} parent=0 // pred_fallthru
    _
  // Predicated region
  $region14: #{cca_forward.5} parent=0 // pred_check
    _
  $region15: #{cca_forward.5} parent=0 // pred_check_branch
    %28 = sbr.rel (0) target = $region17
  $region16: #{cca_forward.5} parent=0 // pred_region
    _
  $region17: #{cca_forward.5} parent=0 // pred_fallthru
    _

</llo_original>
